<compile_context>
chip_gen: v6e
topology: v6e:2x2x1
jax: 0.10.0
libtpu: 0.0.40
codegen_flags: <defaults>
</compile_context>

<pallas_src>
import functools

import numpy as np
import jax
import jax.numpy as jnp
from jax.experimental import pallas as pl
from jax.experimental.pallas import tpu as pltpu

TARGET_DIM = 512   # output_dim of Preprocessing / target_dim of Aggregator


# ----------------------------------------------------------------------------
# Generation-aware VMEM budgets and tile planning (host-side, static).
# ----------------------------------------------------------------------------
def _vmem_limit_bytes():
    """Scoped VMEM limit: half of physical, capped at 64 MiB.

    v5e/v6e (128 MiB physical) -> 64 MiB limit, 16 MiB per-block budget.
    v7x     (64 MiB physical)  -> 32 MiB limit,  8 MiB per-block budget.
    Conservative fallback if the hardware query is unavailable.
    """
    cap = 64 * 1024 * 1024
    try:
        info = pltpu.get_tpu_info()
        cap = int(getattr(info, "vmem_capacity_bytes", cap)) or cap
    except Exception:
        pass
    return max(16 * 1024 * 1024, min(cap // 2, 64 * 1024 * 1024))


def _pad_up(x, m):
    return ((x + m - 1) // m) * m


def _bt_candidates(B):
    # Output block is (bt, tt): bt must be a multiple of 8 or the full batch.
    cands = {B}
    b = 8 * (B // 8)
    while b > 0:
        if B % b == 0:
            cands.add(b)
        b -= 8
    return sorted(cands, reverse=True)


def _tt_candidates(T):
    # tt == T is always legal; smaller tiles must stay lane-dense (mult of 128),
    # which also satisfies bf16/int8 sublane packing (128 % 32 == 0).
    c = [t for t in (T, T // 2, T // 4)
         if t and T % t == 0 and (t == T or t % 128 == 0)]
    return c or [T]


def _wt_candidates(W):
    # Reduction-axis tiles must divide W and be multiples of 128 (or == W).
    cands = {W}
    if W % 128 == 0:
        q = W // 128
        d = 1
        while d * d <= q:
            if q % d == 0:
                cands.add(128 * d)
                cands.add(128 * (q // d))
            d += 1
    return sorted(cands, reverse=True)


def _plan_segment_mean(B, T, W, itemsize):
    """Pick (bt, tt, wt) for a (B, T, W) -> (B, T) segmented mean.

    Prefers >=2 parallel grid blocks (v7x megacore), then fewest grid steps
    (per-step overhead ~0.35us), then the largest input block, subject to a
    per-block VMEM budget (Pallas double-buffers every input block).
    """
    limit = _vmem_limit_bytes()
    budget = limit // 4
    best_key, best = None, None
    for bt in _bt_candidates(B):
        for tt in _tt_candidates(T):
            for wt in _wt_candidates(W):
                in_bytes = bt * tt * _pad_up(wt, 128) * itemsize
                par = (B // bt) * (T // tt)
                steps = par * (W // wt)
                if in_bytes <= budget:
                    key = (1, min(par, 2), -steps, in_bytes)
                else:
                    key = (0, 0, 0, -in_bytes)   # nothing fits: take smallest
                if best_key is None or key > best_key:
                    best_key, best = key, (bt, tt, wt)
    return best, limit


def _plan_weighted(B, T, wmax, itemsize):
    limit = _vmem_limit_bytes()
    budget = limit // 4
    lanes = _pad_up(wmax, 128)
    best_key, best = None, None
    for bt in _bt_candidates(B):
        for tt in _tt_candidates(T):
            blk = bt * tt * lanes * itemsize + tt * lanes * 4
            par = (B // bt) * (T // tt)
            key = (1, min(par, 2), -par, blk) if blk <= budget else (0, 0, 0, -blk)
            if best_key is None or key > best_key:
                best_key, best = key, (bt, tt)
    return best, limit


# ----------------------------------------------------------------------------
# Kernel 1: segmented mean with a W-reduction grid axis.
#   x_ref: (bt, tt, wt) native dtype, o_ref: (bt, tt) f32, acc_ref: VMEM f32.
# Used for adaptive_avg_pool1d whenever L % T == 0 (pool == equal-window mean).
# ----------------------------------------------------------------------------
def _segment_mean_kernel(x_ref, o_ref, acc_ref, *, inv_w):
    k = pl.program_id(2)

    @pl.when(k == 0)
    def _():
        acc_ref[...] = jnp.zeros_like(acc_ref)

    acc_ref[...] += jnp.sum(x_ref[...].astype(jnp.float32), axis=-1)

    @pl.when(k == pl.num_programs(2) - 1)
    def _():
        o_ref[...] = (acc_ref[...] * inv_w).astype(o_ref.dtype)


def _segment_mean_pallas(x3):
    """x3: (B, T, W) any float dtype -> (B, T) f32 mean over last axis."""
    B, T, W = x3.shape
    (bt, tt, wt), vmem_limit = _plan_segment_mean(B, T, W, x3.dtype.itemsize)
    kernel = functools.partial(_segment_mean_kernel, inv_w=1.0 / float(W))
    return pl.pallas_call(
        kernel,
        out_shape=jax.ShapeDtypeStruct((B, T), jnp.float32),
        grid_spec=pltpu.PrefetchScalarGridSpec(
            num_scalar_prefetch=0,
            grid=(B // bt, T // tt, W // wt),
            in_specs=[pl.BlockSpec((bt, tt, wt), lambda i, j, k: (i, j, k))],
            out_specs=pl.BlockSpec((bt, tt), lambda i, j, k: (i, j)),
            scratch_shapes=[pltpu.VMEM((bt, tt), jnp.float32)],
        ),
        compiler_params=pltpu.CompilerParams(
            dimension_semantics=("parallel", "parallel", "arbitrary"),
            vmem_limit_bytes=vmem_limit,
        ),
    )(x3)


# ----------------------------------------------------------------------------
# Kernel 2: weighted segmented sum for the general (L % T != 0) fallback.
#   x_ref: (bt, tt, wmax) gathered windows (native dtype),
#   w_ref: (tt, wmax) f32 weights (1/count inside window, 0 on padded taps),
#   o_ref: (bt, tt) f32.
# Grid order is (T-tiles, batch-tiles) so the weight block index is constant
# across consecutive inner steps and its re-fetch is elided.
# ----------------------------------------------------------------------------
def _weighted_sum_kernel(x_ref, w_ref, o_ref):
    x = x_ref[...].astype(jnp.float32)
    w = w_ref[...]
    o_ref[...] = jnp.sum(x * w[None, :, :], axis=-1).astype(o_ref.dtype)


def _pool_windows(L, T):
    i = np.arange(T)
    starts = (i * L) // T                    # floor(i*L/T)
    ends = -((-(i + 1) * L) // T)            # ceil((i+1)*L/T)
    counts = ends - starts
    wmax = int(counts.max())
    k = np.arange(wmax)
    idx = np.minimum(starts[:, None] + k[None, :], L - 1).astype(np.int32)
    wts = np.where(k[None, :] < counts[:, None],
                   1.0 / counts[:, None].astype(np.float32), 0.0).astype(np.float32)
    return idx, wts, wmax


def _adaptive_pool_general_pallas(x, T):
    """Exact F.adaptive_avg_pool1d for arbitrary L (no dense (L,T) matrix)."""
    B, L = x.shape
    idx, wts, wmax = _pool_windows(L, T)
    xg = jnp.take(x, jnp.asarray(idx.reshape(-1)), axis=1).reshape(B, T, wmax)
    (bt, tt), vmem_limit = _plan_weighted(B, T, wmax, x.dtype.itemsize)
    return pl.pallas_call(
        _weighted_sum_kernel,
        out_shape=jax.ShapeDtypeStruct((B, T), jnp.float32),
        grid_spec=pltpu.PrefetchScalarGridSpec(
            num_scalar_prefetch=0,
            grid=(T // tt, B // bt),
            in_specs=[pl.BlockSpec((bt, tt, wmax), lambda j, i: (i, j, 0)),
                      pl.BlockSpec((tt, wmax), lambda j, i: (j, 0))],
            out_specs=pl.BlockSpec((bt, tt), lambda j, i: (i, j)),
        ),
        compiler_params=pltpu.CompilerParams(
            dimension_semantics=("parallel", "parallel"),
            vmem_limit_bytes=vmem_limit,
        ),
    )(xg, jnp.asarray(wts))


def adaptive_avg_pool1d_pallas(x, T):
    """x: (B, L) -> (B, T) f32, matching F.adaptive_avg_pool1d semantics."""
    B, L = x.shape
    if L % T == 0:
        return _segment_mean_pallas(x.reshape(B, T, L // T))
    return _adaptive_pool_general_pallas(x, T)


def _adaptive_pool_jnp(x, T):
    """Tiny exact adaptive pool in plain jnp (used only for the (B, n*512)
    aggregator in the generic fallback — a few KB of data)."""
    B, L = x.shape
    idx, wts, wmax = _pool_windows(L, T)
    xg = jnp.take(x.astype(jnp.float32), jnp.asarray(idx.reshape(-1)),
                  axis=1).reshape(B, T, wmax)
    return jnp.sum(xg * jnp.asarray(wts)[None], axis=-1)


# ----------------------------------------------------------------------------
# NetworkFeatureAggregator.feature_extraction equivalent (post backbone+hooks).
# ----------------------------------------------------------------------------
def feature_extraction(features):
    """features: list of per-layer feature maps, each (B, C_l, H_l, W_l) NCHW.

    Returns the (B, 512) aggregated embedding (f32 accumulation).
    Features stream in their native dtype (e.g. bf16) — no wrapper upcast.
    """
    B = features[0].shape[0]
    n = len(features)
    flat = [jnp.reshape(f, (B, -1)) for f in features]          # metadata-only
    Ls = [int(x.shape[1]) for x in flat]

    # Fast path: MeanMapper + Aggregator fuse algebraically. When 512 % n == 0
    # and every L_l % 512 == 0, the Aggregator windows never cross layers, so
    # layer l owns output columns [l*chunk, (l+1)*chunk) and each column is a
    # plain mean over a contiguous window of width L_l // chunk.
    if TARGET_DIM % n == 0 and all(L % TARGET_DIM == 0 for L in Ls):
        chunk = TARGET_DIM // n
        pooled = [_segment_mean_pallas(x.reshape(B, chunk, L // chunk))
                  for x, L in zip(flat, Ls)]                     # each (B, chunk)
        return jnp.concatenate(pooled, axis=1)                   # (B, 512)

    # Generic path: per-layer MeanMapper kernels; the (B, n*512) -> (B, 512)
    # aggregator is a few KB, so do it in plain jnp (no lane-sparse kernel).
    pooled = [adaptive_avg_pool1d_pallas(x, TARGET_DIM) for x in flat]
    stacked = jnp.stack(pooled, axis=1).reshape(B, -1)           # (B, n*512) f32
    return _adaptive_pool_jnp(stacked, TARGET_DIM)


# ----------------------------------------------------------------------------
# Pure-JAX reference (dense pooling matrix, only for correctness checking).
# ----------------------------------------------------------------------------
def _make_pool_matrix(L, T):
    i = np.arange(T)
    starts = (i * L) // T
    ends = -((-(i + 1) * L) // T)
    counts = (ends - starts).astype(np.float32)
    j = np.arange(L)[:, None]
    mask = (j >= starts[None, :]) & (j < ends[None, :])
    return mask.astype(np.float32) / counts[None, :]


def _ref_adaptive_pool(x, T):
    P = jnp.asarray(_make_pool_matrix(x.shape[1], T))
    return jnp.matmul(x, P, precision=jax.lax.Precision.HIGHEST)


def _ref_feature_extraction(features):
    B = features[0].shape[0]
    pooled = [_ref_adaptive_pool(f.reshape(B, -1).astype(jnp.float32), TARGET_DIM)
              for f in features]
    stacked = jnp.stack(pooled, axis=1)
    return _ref_adaptive_pool(stacked.reshape(B, -1), TARGET_DIM)


if __name__ == "__main__":
    key = jax.random.PRNGKey(0)
    k1, k2, k3, k4, k5 = jax.random.split(key, 5)

    # 1) Divisible shapes -> algebraically fused per-layer segmented means (f32).
    feat_a = jax.random.normal(k1, (2, 4, 16, 16), dtype=jnp.float32)   # L = 1024
    feat_b = jax.random.normal(k2, (2, 8, 8, 8), dtype=jnp.float32)     # L = 512
    out = jax.block_until_ready(feature_extraction([feat_a, feat_b]))
    assert out.shape == (2, TARGET_DIM), out.shape
    ref = jax.block_until_ready(_ref_feature_extraction([feat_a, feat_b]))
    assert np.allclose(np.asarray(out), np.asarray(ref), atol=1e-4, rtol=1e-4)

    # 2) Non-divisible layer exercises the general weighted-sum kernel and the
    #    generic (unfused) MeanMapper/Aggregator path.
    feat_c = jax.random.normal(k3, (2, 3, 7, 7), dtype=jnp.float32)     # L = 147
    out2 = jax.block_until_ready(feature_extraction([feat_a, feat_c]))
    ref2 = jax.block_until_ready(_ref_feature_extraction([feat_a, feat_c]))
    assert np.allclose(np.asarray(out2), np.asarray(ref2), atol=1e-4, rtol=1e-4)

    # 3) bf16 features stream in their native dtype (no wrapper-side f32 upcast).
    feat_d = jax.random.normal(k4, (2, 128, 16, 16),
                               dtype=jnp.float32).astype(jnp.bfloat16)  # L = 32768
    feat_e = jax.random.normal(k5, (2, 512, 8, 8),
                               dtype=jnp.float32).astype(jnp.bfloat16)  # L = 32768
    out3 = jax.block_until_ready(feature_extraction([feat_d, feat_e]))
    ref3 = jax.block_until_ready(_ref_feature_extraction([feat_d, feat_e]))
    assert out3.dtype == jnp.float32 and out3.shape == (2, TARGET_DIM)
    assert np.allclose(np.asarray(out3), np.asarray(ref3), atol=2e-3, rtol=2e-3)

    print("KERNEL_OK")
</pallas_src>

<mosaic_0001>
module attributes {stable_mosaic.version = 11 : i64} {
  func.func @_segment_mean_kernel(%arg0: i32, %arg1: i32, %arg2: i32, %arg3: memref<2x128x4xf32, #tpu.memory_space<vmem>>, %arg4: memref<2x128xf32, #tpu.memory_space<vmem>>, %arg5: memref<2x128xf32, #tpu.memory_space<vmem>>) attributes {dimension_semantics = [#tpu.dimension_semantics<parallel>, #tpu.dimension_semantics<parallel>, #tpu.dimension_semantics<arbitrary>], iteration_bounds = array<i64: 1, 2, 1>, scalar_prefetch = 0 : i64, scratch_operands = 1 : i64, tpu.core_type = #tpu.core_type<tc>, window_params = [{transform_indices = @transform_0, window_bounds = array<i64: 2, 128, 4>}, {transform_indices = @transform_1, window_bounds = array<i64: 2, 128>}]} {
    %c0_i32 = arith.constant 0 : i32
    %0 = arith.cmpi eq, %arg2, %c0_i32 : i32
    %1 = arith.extui %0 : i1 to i32
    %c0_i32_0 = arith.constant 0 : i32
    %2 = arith.cmpi ne, %1, %c0_i32_0 : i32
    scf.if %2 {
      %cst_9 = arith.constant 0.000000e+00 : f32
      %11 = vector.broadcast %cst_9 : f32 to vector<2x128xf32>
      %c0_10 = arith.constant 0 : index
      %c0_11 = arith.constant 0 : index
      %12 = vector.load %arg5[%c0_10, %c0_11] : memref<2x128xf32, #tpu.memory_space<vmem>>, vector<2x128xf32>
      tpu.vector_store %arg5[%c0_10, %c0_11], %11 {strides = array<i32>} : memref<2x128xf32, #tpu.memory_space<vmem>>, vector<2x128xf32>,
    } else {
    }
    %c0 = arith.constant 0 : index
    %c0_1 = arith.constant 0 : index
    %3 = vector.load %arg5[%c0, %c0_1] : memref<2x128xf32, #tpu.memory_space<vmem>>, vector<2x128xf32>
    %c0_2 = arith.constant 0 : index
    %c0_3 = arith.constant 0 : index
    %c0_4 = arith.constant 0 : index
    %4 = vector.load %arg3[%c0_2, %c0_3, %c0_4] : memref<2x128x4xf32, #tpu.memory_space<vmem>>, vector<2x128x4xf32>
    %cst = arith.constant dense<0.000000e+00> : vector<2x128xf32>
    %5 = vector.multi_reduction <add>, %4, %cst [2] : vector<2x128x4xf32> to vector<2x128xf32>
    %6 = arith.addf %3, %5 : vector<2x128xf32>
    %c0_5 = arith.constant 0 : index
    %c0_6 = arith.constant 0 : index
    %7 = vector.load %arg5[%c0_5, %c0_6] : memref<2x128xf32, #tpu.memory_space<vmem>>, vector<2x128xf32>
    tpu.vector_store %arg5[%c0_5, %c0_6], %6 {strides = array<i32>} : memref<2x128xf32, #tpu.memory_space<vmem>>, vector<2x128xf32>,
    %c0_i32_7 = arith.constant 0 : i32
    %8 = arith.cmpi eq, %arg2, %c0_i32_7 : i32
    %9 = arith.extui %8 : i1 to i32
    %c0_i32_8 = arith.constant 0 : i32
    %10 = arith.cmpi ne, %9, %c0_i32_8 : i32
    scf.if %10 {
      %c0_9 = arith.constant 0 : index
      %c0_10 = arith.constant 0 : index
      %11 = vector.load %arg5[%c0_9, %c0_10] : memref<2x128xf32, #tpu.memory_space<vmem>>, vector<2x128xf32>
      %cst_11 = arith.constant 2.500000e-01 : f32
      %12 = vector.broadcast %cst_11 : f32 to vector<2x128xf32>
      %13 = arith.mulf %11, %12 : vector<2x128xf32>
      %c0_12 = arith.constant 0 : index
      %c0_13 = arith.constant 0 : index
      %14 = vector.load %arg4[%c0_12, %c0_13] : memref<2x128xf32, #tpu.memory_space<vmem>>, vector<2x128xf32>
      tpu.vector_store %arg4[%c0_12, %c0_13], %13 {strides = array<i32>} : memref<2x128xf32, #tpu.memory_space<vmem>>, vector<2x128xf32>,
    } else {
    }
    return
  }
  func.func @transform_0(%arg0: i32, %arg1: i32, %arg2: i32) -> (i32, i32, i32) {
    %c0_i32 = arith.constant 0 : i32
    return %arg0, %arg1, %arg2 : i32, i32, i32
  }
  func.func @transform_1(%arg0: i32, %arg1: i32, %arg2: i32) -> (i32, i32) {
    %c0_i32 = arith.constant 0 : i32
    return %arg0, %arg1 : i32, i32
  }
}

</mosaic_0001>

<llo_original>
// kernel: tpu_custom_call.1
$region0: #{tpu_custom_call.1}
  #allocation0 [shape = 'u32[]', space=smem, size = 0x4, offset = 0x4, fixed_abs, tag = 'smem constant byte address 0x4 - core index']
  #allocation1 [shape = 'u32[144,128]{1,0:T(1,128)}', space=vmem, size = 0x12000, scoped, tag = 'internal scratch']
  #allocation2 [shape = 'f32[2,128]{1,0:T(2,128)}', space=vmem, size = 0x400, scoped, tag = 'scratch operand']
  %s0 = inlined_call_operand.vmem [shape: f32[2,256,4], index: 0, kind: input, shape index: {}]
  %s1 = inlined_call_operand.hbm [shape: f32[2,256], index: 1, kind: output, shape index: {}]
  %s2 = sld [smem:[#allocation0]]
  $region83: #{tpu_custom_call.1} parent=0
    _
  %s4 = ssub.s32 1, %s2
  %s5 = scalar_select 0, %s4, %s2
  $region1: #{tpu_custom_call.1} parent=0
    #allocation3 [shape = 'u8[262144]{0}', space=vmem, size = 0x40000, scoped, tag = 'input window, operand 0']
    #allocation4 [shape = 'u8[2048]{0}', space=vmem, size = 0x800, scoped, tag = 'output window, operand 0']
    #allocation5 [shape = 's32[2]{0}', space=sflag, size = 0x8, scoped, tag = 'scoped memory for tpu_custom_call.1']
    %6 = vsyncpa [#allocation5], 0
    %s7 = scalar_lea.sflag [#allocation5], 1
    %8 = vsyncpa %s7, 0
    loop: start=0, step=1, limit=4
    $region2: #{tpu_custom_call.1} parent=1 // loop_pre_header
      _
    $region3: #{tpu_custom_call.1} parent=1 // loop_header
      %s10 = sphi 0, %s14
      %p11 = scmp.ge.s32.totalorder %s10, 4
      %s17 = sphi 0, %s36
      %s18 = sphi 0, %s32
      %s19 = sphi 0, %s28
      %s20 = sphi 0, %s17
      %s21 = sphi 0, %s18
      %s22 = sphi 0, %s19
      %s23 = sphi 0, %s20
      %s24 = sphi 0, %s21
      %s25 = sphi 0, %s22
      %s43 = sphi 0, %s45
      %s46 = sphi 0, %s43
      %s47 = sphi 0, %s46
      %s63 = sphi 0, %s47
      %s71 = sphi 0, %s73
      %s74 = sphi 0, %s71
      %s75 = sphi 0, %s74
      %s91 = sphi 0, %s75
    $region4: #{tpu_custom_call.1} parent=1 // loop_header_branch
      %13 = sbr.rel (%p11) target = $region8
    $region5: #{tpu_custom_call.1} parent=1 // loop_body
      %s15 = ssub.s32 %s10, 1
      %s16 = ssub.s32 %s10, 2
      %s26 = sadd.s32 1, %s19
      %p27 = scmp.ge.s32.totalorder %s26, 1
      %s28 = scalar_select %p27, 0, %s26
      %s29 = sadd.s32 1, %s18
      %s30 = scalar_select %p27, %s29, %s18
      %p31 = scmp.ge.s32.totalorder %s30, 2
      %s32 = scalar_select %p31, 0, %s30
      %s33 = sadd.s32 1, %s17
      %s34 = scalar_select %p31, %s33, %s17
      %p35 = scmp.ge.s32.totalorder %s34, 1
      %s36 = scalar_select %p35, 0, %s34
      %s37 = ssub.s32 %s17, %s36
      %s38 = ssub.s32 %s18, %s32
      %s39 = sor.u32 %s37, %s38
      %s40 = ssub.s32 %s19, %s28
      %s41 = sor.u32 %s39, %s40
      %p42 = scmp.eq.s32.totalorder %s41, 0
      %s44 = sadd.s32 %s43, 1
      %s45 = scalar_select %p42, %s43, %s44
      %p48 = pneg %p42
      %p49 = scmp.eq.s32.totalorder %s10, 1
      %p50 = por %p48, %p49
      %p51 = scmp.ne.s32.totalorder %s43, %s46
      %p52 = scmp.eq.s32.totalorder %s10, 0
      %p53 = por %p51, %p52
      %p54 = scmp.ne.s32.totalorder %s43, %s46
      %p55 = scmp.eq.s32.totalorder %s15, 1
      %p56 = por %p54, %p55
      %p57 = scmp.ne.s32.totalorder %s46, %s47
      %p58 = scmp.eq.s32.totalorder %s15, 0
      %p59 = por %p57, %p58
      %p60 = scmp.ne.s32.totalorder %s46, %s47
      %p61 = scmp.eq.s32.totalorder %s16, 1
      %p62 = por %p60, %p61
      %p64 = scmp.ne.s32.totalorder %s47, %s63
      %p65 = scmp.eq.s32.totalorder %s16, 0
      %p66 = por %p64, %p65
      %s67 = ssub.s32 %s17, %s36
      %s68 = ssub.s32 %s18, %s32
      %s69 = sor.u32 %s67, %s68
      %p70 = scmp.eq.s32.totalorder %s69, 0
      %s72 = sadd.s32 %s71, 1
      %s73 = scalar_select %p70, %s71, %s72
      %p76 = pneg %p70
      %p77 = scmp.eq.s32.totalorder %s10, 1
      %p78 = por %p76, %p77
      %p79 = scmp.ne.s32.totalorder %s71, %s74
      %p80 = scmp.eq.s32.totalorder %s10, 0
      %p81 = por %p79, %p80
      %p82 = scmp.ne.s32.totalorder %s71, %s74
      %p83 = scmp.eq.s32.totalorder %s15, 1
      %p84 = por %p82, %p83
      %p85 = scmp.ne.s32.totalorder %s74, %s75
      %p86 = scmp.eq.s32.totalorder %s15, 0
      %p87 = por %p85, %p86
      %p88 = scmp.ne.s32.totalorder %s74, %s75
      %p89 = scmp.eq.s32.totalorder %s16, 1
      %p90 = por %p88, %p89
      %p92 = scmp.ne.s32.totalorder %s75, %s91
      %p93 = scmp.eq.s32.totalorder %s16, 0
      %p94 = por %p92, %p93
      %p95 = scmp.le.s32.totalorder 1, %s10
      %p96 = scmp.lt.s32.totalorder %s10, 3
      %p97 = pnand %p95, %p96
      %p98 = pneg %p97
      // Predicated region
      $region9: #{tpu_custom_call.1} parent=5 // pred_check
        _
      $region10: #{tpu_custom_call.1} parent=5 // pred_check_branch
        %100 = sbr.rel (%p97) target = $region12
      $region11: #{tpu_custom_call.1} parent=5 // pred_region
        %s101 = ssub.s32 %s10, 1
      $region12: #{tpu_custom_call.1} parent=5 // pred_fallthru
        _
      %p102 = scmp.lt.s32.totalorder %s10, 2
      // Predicated region
      $region13: #{tpu_custom_call.1} parent=5 // pred_check
        %p103 = pneg %p102
      $region14: #{tpu_custom_call.1} parent=5 // pred_check_branch
        %105 = sbr.rel (%p103) target = $region16
      $region15: #{tpu_custom_call.1} parent=5 // pred_region
        // Predicated region
        $region17: #{tpu_custom_call.1} parent=15 // pred_check
          %p106 = pneg %p53
        $region18: #{tpu_custom_call.1} parent=15 // pred_check_branch
          %108 = sbr.rel (%p106) target = $region20
        $region19: #{tpu_custom_call.1} parent=15 // pred_region
          %s109 = sand.u32 %s43, 1
          %s110 = sand.u32 %s43, 1
          %s111 = smul.addr %s110, 256
          %s112 = scalar_lea.vmem [#allocation3], %s111
          %s113 = smul.u32 2, %s17
          %s114 = smul.u32 16, %s18
          %s115 = sadd.s32 %s19, %s114
          %s116 = smul.addr %s113, 32
          %s117 = sadd.s32 %s115, %s116
          %s118 = smul.addr %s117, 8
          %s119 = scalar_lea.vmem %s0, %s118
          // Predicated region
          $region21: #{tpu_custom_call.1} parent=19 // pred_check
            _
          $region22: #{tpu_custom_call.1} parent=19 // pred_check_branch
            %121 = sbr.rel (0) target = $region24
          $region23: #{tpu_custom_call.1} parent=19 // pred_region
            // Predicated region
            $region25: #{tpu_custom_call.1} parent=23 // pred_check
              _
            $region26: #{tpu_custom_call.1} parent=23 // pred_check_branch
              %123 = sbr.rel (0) target = $region28
            $region27: #{tpu_custom_call.1} parent=23 // pred_region
              // Predicated region
              $region40: #{tpu_custom_call.1} parent=27 // pred_check
                _
              $region41: #{tpu_custom_call.1} parent=27 // pred_check_branch
                %201 = sbr.rel (0) target = $region43
              $region42: #{tpu_custom_call.1} parent=27 // pred_region
                loop: start=0, step=1, limit=1
                $region44: #{tpu_custom_call.1} parent=42 // loop_pre_header
                  _
                $region45: #{tpu_custom_call.1} parent=42 // loop_header
                  %s203 = sphi 0, %s207
                  %p204 = scmp.ge.s32.totalorder %s203, 1
                  %s208 = sphi %s119, %s119
                  %s209 = sphi %s112, %s112
                $region46: #{tpu_custom_call.1} parent=42 // loop_header_branch
                  %206 = sbr.rel (%p204) target = $region50
                $region47: #{tpu_custom_call.1} parent=42 // loop_body
                  %v210 = vld [vmem:[%s208] sm:$0xff]
                  %211 = vst [vmem:[%s209] sm:$0xff] %v210
                  %v212 = vld [vmem:[%s208 + $0x8] sm:$0xff]
                  %213 = vst [vmem:[%s209 + $0x8] sm:$0xff] %v212
                  %v214 = vld [vmem:[%s208 + $0x10] sm:$0xff]
                  %215 = vst [vmem:[%s209 + $0x10] sm:$0xff] %v214
                  %v216 = vld [vmem:[%s208 + $0x18] sm:$0xff]
                  %217 = vst [vmem:[%s209 + $0x18] sm:$0xff] %v216
                  %v218 = vld [vmem:[%s208 + $0x20] sm:$0xff]
                  %219 = vst [vmem:[%s209 + $0x20] sm:$0xff] %v218
                  %v220 = vld [vmem:[%s208 + $0x28] sm:$0xff]
                  %221 = vst [vmem:[%s209 + $0x28] sm:$0xff] %v220
                  %v222 = vld [vmem:[%s208 + $0x30] sm:$0xff]
                  %223 = vst [vmem:[%s209 + $0x30] sm:$0xff] %v222
                  %v224 = vld [vmem:[%s208 + $0x38] sm:$0xff]
                  %225 = vst [vmem:[%s209 + $0x38] sm:$0xff] %v224
                  %v226 = vld [vmem:[%s208 + $0x40] sm:$0xff]
                  %227 = vst [vmem:[%s209 + $0x40] sm:$0xff] %v226
                  %v228 = vld [vmem:[%s208 + $0x48] sm:$0xff]
                  %229 = vst [vmem:[%s209 + $0x48] sm:$0xff] %v228
                  %v230 = vld [vmem:[%s208 + $0x50] sm:$0xff]
                  %231 = vst [vmem:[%s209 + $0x50] sm:$0xff] %v230
                  %v232 = vld [vmem:[%s208 + $0x58] sm:$0xff]
                  %233 = vst [vmem:[%s209 + $0x58] sm:$0xff] %v232
                  %v234 = vld [vmem:[%s208 + $0x60] sm:$0xff]
                  %235 = vst [vmem:[%s209 + $0x60] sm:$0xff] %v234
                  %v236 = vld [vmem:[%s208 + $0x68] sm:$0xff]
                  %237 = vst [vmem:[%s209 + $0x68] sm:$0xff] %v236
                  %v238 = vld [vmem:[%s208 + $0x70] sm:$0xff]
                  %239 = vst [vmem:[%s209 + $0x70] sm:$0xff] %v238
                  %v240 = vld [vmem:[%s208 + $0x78] sm:$0xff]
                  %241 = vst [vmem:[%s209 + $0x78] sm:$0xff] %v240
                  %v242 = vld [vmem:[%s208 + $0x100] sm:$0xff]
                  %243 = vst [vmem:[%s209 + $0x80] sm:$0xff] %v242
                  %v244 = vld [vmem:[%s208 + $0x108] sm:$0xff]
                  %245 = vst [vmem:[%s209 + $0x88] sm:$0xff] %v244
                  %v246 = vld [vmem:[%s208 + $0x110] sm:$0xff]
                  %247 = vst [vmem:[%s209 + $0x90] sm:$0xff] %v246
                  %v248 = vld [vmem:[%s208 + $0x118] sm:$0xff]
                  %249 = vst [vmem:[%s209 + $0x98] sm:$0xff] %v248
                  %v250 = vld [vmem:[%s208 + $0x120] sm:$0xff]
                  %251 = vst [vmem:[%s209 + $0xa0] sm:$0xff] %v250
                  %v252 = vld [vmem:[%s208 + $0x128] sm:$0xff]
                  %253 = vst [vmem:[%s209 + $0xa8] sm:$0xff] %v252
                  %v254 = vld [vmem:[%s208 + $0x130] sm:$0xff]
                  %255 = vst [vmem:[%s209 + $0xb0] sm:$0xff] %v254
                  %v256 = vld [vmem:[%s208 + $0x138] sm:$0xff]
                  %257 = vst [vmem:[%s209 + $0xb8] sm:$0xff] %v256
                  %v258 = vld [vmem:[%s208 + $0x140] sm:$0xff]
                  %259 = vst [vmem:[%s209 + $0xc0] sm:$0xff] %v258
                  %v260 = vld [vmem:[%s208 + $0x148] sm:$0xff]
                  %261 = vst [vmem:[%s209 + $0xc8] sm:$0xff] %v260
                  %v262 = vld [vmem:[%s208 + $0x150] sm:$0xff]
                  %263 = vst [vmem:[%s209 + $0xd0] sm:$0xff] %v262
                  %v264 = vld [vmem:[%s208 + $0x158] sm:$0xff]
                  %265 = vst [vmem:[%s209 + $0xd8] sm:$0xff] %v264
                  %v266 = vld [vmem:[%s208 + $0x160] sm:$0xff]
                  %267 = vst [vmem:[%s209 + $0xe0] sm:$0xff] %v266
                  %v268 = vld [vmem:[%s208 + $0x168] sm:$0xff]
                  %269 = vst [vmem:[%s209 + $0xe8] sm:$0xff] %v268
                  %v270 = vld [vmem:[%s208 + $0x170] sm:$0xff]
                  %271 = vst [vmem:[%s209 + $0xf0] sm:$0xff] %v270
                  %v272 = vld [vmem:[%s208 + $0x178] sm:$0xff]
                  %273 = vst [vmem:[%s209 + $0xf8] sm:$0xff] %v272
                $region48: #{tpu_custom_call.1} parent=42 // loop_footer
                  %s207 = sadd.s32 1, %s203
                $region49: #{tpu_custom_call.1} parent=42 // loop_footer_branch
                  %202 = sbr.rel target = $region45
                $region50: #{tpu_custom_call.1} parent=42 // loop_exit
                  _
              $region43: #{tpu_custom_call.1} parent=27 // pred_fallthru
                _
              // Predicated region
              $region51: #{tpu_custom_call.1} parent=27 // pred_check
                _
              $region52: #{tpu_custom_call.1} parent=27 // pred_check_branch
                %275 = sbr.rel target = $region54
              $region53: #{tpu_custom_call.1} parent=27 // pred_region
                _
              $region54: #{tpu_custom_call.1} parent=27 // pred_fallthru
                _
            $region28: #{tpu_custom_call.1} parent=23 // pred_fallthru
              _
            // Predicated region
            $region29: #{tpu_custom_call.1} parent=23 // pred_check
              _
            $region30: #{tpu_custom_call.1} parent=23 // pred_check_branch
              %125 = sbr.rel target = $region32
            $region31: #{tpu_custom_call.1} parent=23 // pred_region
              %s127 = ssub.s32 256, 1
              loop: start=0, step=1, limit=1
              $region33: #{tpu_custom_call.1} parent=31 // loop_pre_header
                _
              $region34: #{tpu_custom_call.1} parent=31 // loop_header
                %s129 = sphi 0, %s133
                %p130 = scmp.ge.s32.totalorder %s129, 1
                %s134 = sphi %s119, %s119
                %s135 = sphi %s112, %s112
              $region35: #{tpu_custom_call.1} parent=31 // loop_header_branch
                %132 = sbr.rel (%p130) target = $region39
              $region36: #{tpu_custom_call.1} parent=31 // loop_body
                %v136 = vld [vmem:[%s134] sm:%s127]
                %137 = vst [vmem:[%s135] sm:%s127] %v136
                %v138 = vld [vmem:[%s134 + $0x8] sm:%s127]
                %139 = vst [vmem:[%s135 + $0x8] sm:%s127] %v138
                %v140 = vld [vmem:[%s134 + $0x10] sm:%s127]
                %141 = vst [vmem:[%s135 + $0x10] sm:%s127] %v140
                %v142 = vld [vmem:[%s134 + $0x18] sm:%s127]
                %143 = vst [vmem:[%s135 + $0x18] sm:%s127] %v142
                %v144 = vld [vmem:[%s134 + $0x20] sm:%s127]
                %145 = vst [vmem:[%s135 + $0x20] sm:%s127] %v144
                %v146 = vld [vmem:[%s134 + $0x28] sm:%s127]
                %147 = vst [vmem:[%s135 + $0x28] sm:%s127] %v146
                %v148 = vld [vmem:[%s134 + $0x30] sm:%s127]
                %149 = vst [vmem:[%s135 + $0x30] sm:%s127] %v148
                %v150 = vld [vmem:[%s134 + $0x38] sm:%s127]
                %151 = vst [vmem:[%s135 + $0x38] sm:%s127] %v150
                %v152 = vld [vmem:[%s134 + $0x40] sm:%s127]
                %153 = vst [vmem:[%s135 + $0x40] sm:%s127] %v152
                %v154 = vld [vmem:[%s134 + $0x48] sm:%s127]
                %155 = vst [vmem:[%s135 + $0x48] sm:%s127] %v154
                %v156 = vld [vmem:[%s134 + $0x50] sm:%s127]
                %157 = vst [vmem:[%s135 + $0x50] sm:%s127] %v156
                %v158 = vld [vmem:[%s134 + $0x58] sm:%s127]
                %159 = vst [vmem:[%s135 + $0x58] sm:%s127] %v158
                %v160 = vld [vmem:[%s134 + $0x60] sm:%s127]
                %161 = vst [vmem:[%s135 + $0x60] sm:%s127] %v160
                %v162 = vld [vmem:[%s134 + $0x68] sm:%s127]
                %163 = vst [vmem:[%s135 + $0x68] sm:%s127] %v162
                %v164 = vld [vmem:[%s134 + $0x70] sm:%s127]
                %165 = vst [vmem:[%s135 + $0x70] sm:%s127] %v164
                %v166 = vld [vmem:[%s134 + $0x78] sm:%s127]
                %167 = vst [vmem:[%s135 + $0x78] sm:%s127] %v166
                %v168 = vld [vmem:[%s134 + $0x100] sm:%s127]
                %169 = vst [vmem:[%s135 + $0x80] sm:%s127] %v168
                %v170 = vld [vmem:[%s134 + $0x108] sm:%s127]
                %171 = vst [vmem:[%s135 + $0x88] sm:%s127] %v170
                %v172 = vld [vmem:[%s134 + $0x110] sm:%s127]
                %173 = vst [vmem:[%s135 + $0x90] sm:%s127] %v172
                %v174 = vld [vmem:[%s134 + $0x118] sm:%s127]
                %175 = vst [vmem:[%s135 + $0x98] sm:%s127] %v174
                %v176 = vld [vmem:[%s134 + $0x120] sm:%s127]
                %177 = vst [vmem:[%s135 + $0xa0] sm:%s127] %v176
                %v178 = vld [vmem:[%s134 + $0x128] sm:%s127]
                %179 = vst [vmem:[%s135 + $0xa8] sm:%s127] %v178
                %v180 = vld [vmem:[%s134 + $0x130] sm:%s127]
                %181 = vst [vmem:[%s135 + $0xb0] sm:%s127] %v180
                %v182 = vld [vmem:[%s134 + $0x138] sm:%s127]
                %183 = vst [vmem:[%s135 + $0xb8] sm:%s127] %v182
                %v184 = vld [vmem:[%s134 + $0x140] sm:%s127]
                %185 = vst [vmem:[%s135 + $0xc0] sm:%s127] %v184
                %v186 = vld [vmem:[%s134 + $0x148] sm:%s127]
                %187 = vst [vmem:[%s135 + $0xc8] sm:%s127] %v186
                %v188 = vld [vmem:[%s134 + $0x150] sm:%s127]
                %189 = vst [vmem:[%s135 + $0xd0] sm:%s127] %v188
                %v190 = vld [vmem:[%s134 + $0x158] sm:%s127]
                %191 = vst [vmem:[%s135 + $0xd8] sm:%s127] %v190
                %v192 = vld [vmem:[%s134 + $0x160] sm:%s127]
                %193 = vst [vmem:[%s135 + $0xe0] sm:%s127] %v192
                %v194 = vld [vmem:[%s134 + $0x168] sm:%s127]
                %195 = vst [vmem:[%s135 + $0xe8] sm:%s127] %v194
                %v196 = vld [vmem:[%s134 + $0x170] sm:%s127]
                %197 = vst [vmem:[%s135 + $0xf0] sm:%s127] %v196
                %v198 = vld [vmem:[%s134 + $0x178] sm:%s127]
                %199 = vst [vmem:[%s135 + $0xf8] sm:%s127] %v198
              $region37: #{tpu_custom_call.1} parent=31 // loop_footer
                %s133 = sadd.s32 1, %s129
              $region38: #{tpu_custom_call.1} parent=31 // loop_footer_branch
                %128 = sbr.rel target = $region34
              $region39: #{tpu_custom_call.1} parent=31 // loop_exit
                _
            $region32: #{tpu_custom_call.1} parent=23 // pred_fallthru
              _
          $region24: #{tpu_custom_call.1} parent=19 // pred_fallthru
            _
          %276 = vnop
        $region20: #{tpu_custom_call.1} parent=15 // pred_fallthru
          _
      $region16: #{tpu_custom_call.1} parent=5 // pred_fallthru
        _
      %p277 = scmp.le.s32.totalorder 1, %s10
      %p278 = scmp.lt.s32.totalorder %s10, 3
      %p279 = pnand %p277, %p278
      %p280 = pneg %p279
      // Predicated region
      $region55: #{tpu_custom_call.1} parent=5 // pred_check
        _
      $region56: #{tpu_custom_call.1} parent=5 // pred_check_branch
        %282 = sbr.rel (%p279) target = $region58
      $region57: #{tpu_custom_call.1} parent=5 // pred_region
        %s283 = ssub.s32 %s10, 1
        %s284 = sand.u32 %s46, 1
        %s285 = sand.u32 %s46, 1
        %s286 = smul.addr %s285, 256
        %s287 = scalar_lea.vmem [#allocation3], %s286
        // Predicated region
        $region59: #{tpu_custom_call.1} parent=57 // pred_check
          %p288 = pneg %p59
        $region60: #{tpu_custom_call.1} parent=57 // pred_check_branch
          %290 = sbr.rel (%p288) target = $region62
        $region61: #{tpu_custom_call.1} parent=57 // pred_region
          _
        $region62: #{tpu_custom_call.1} parent=57 // pred_fallthru
          _
        %s291 = sand.u32 %s46, 1
        %s292 = sand.u32 %s46, 1
        %s293 = smul.addr %s292, 256
        %s294 = scalar_lea.vmem [#allocation3], %s293
        %p295 = pneg %p59
        %p296 = pneg %p56
        %p297 = pneg %p87
        %p298 = pneg %p84
        %s299 = sand.u32 %s74, 1
        %s300 = scalar_lea.sflag [#allocation5], %s299
        %s301 = sand.u32 %s74, 1
        %s302 = smul.addr %s301, 2
        %s303 = scalar_lea.vmem [#allocation4], %s302
        %s304 = smul.u32 2, %s20
        %s305 = smul.u32 16, %s21
        %p306 = scmp.eq.s32.totalorder %s22, 0
        // Predicated region
        $region63: #{tpu_custom_call.1} parent=57 // pred_check
          %p307 = pneg %p306
        $region64: #{tpu_custom_call.1} parent=57 // pred_check_branch
          %309 = sbr.rel (%p307) target = $region66
        $region65: #{tpu_custom_call.1} parent=57 // pred_region
          %310 = vst [vmem:[#allocation2] sm:$0x3] 0.0
        $region66: #{tpu_custom_call.1} parent=57 // pred_fallthru
          _
        %v311 = vld [vmem:[#allocation2] sm:$0x3]
        %v312 = vld [vmem:[%s287] sm:$0xff]
        %v313 = vld [vmem:[%s287 + $0x8] sm:$0xff]
        %v314 = vld [vmem:[%s287 + $0x10] sm:$0xff]
        %v315 = vld [vmem:[%s287 + $0x18] sm:$0xff]
        %v316 = vld [vmem:[%s287 + $0x20] sm:$0xff]
        %v317 = vld [vmem:[%s287 + $0x28] sm:$0xff]
        %v318 = vld [vmem:[%s287 + $0x30] sm:$0xff]
        %v319 = vld [vmem:[%s287 + $0x38] sm:$0xff]
        %v320 = vld [vmem:[%s287 + $0x40] sm:$0xff]
        %v321 = vld [vmem:[%s287 + $0x48] sm:$0xff]
        %v322 = vld [vmem:[%s287 + $0x50] sm:$0xff]
        %v323 = vld [vmem:[%s287 + $0x58] sm:$0xff]
        %v324 = vld [vmem:[%s287 + $0x60] sm:$0xff]
        %v325 = vld [vmem:[%s287 + $0x68] sm:$0xff]
        %v326 = vld [vmem:[%s287 + $0x70] sm:$0xff]
        %v327 = vld [vmem:[%s287 + $0x78] sm:$0xff]
        %v328 = vld [vmem:[%s287 + $0x80] sm:$0xff]
        %v329 = vld [vmem:[%s287 + $0x88] sm:$0xff]
        %v330 = vld [vmem:[%s287 + $0x90] sm:$0xff]
        %v331 = vld [vmem:[%s287 + $0x98] sm:$0xff]
        %v332 = vld [vmem:[%s287 + $0xa0] sm:$0xff]
        %v333 = vld [vmem:[%s287 + $0xa8] sm:$0xff]
        %v334 = vld [vmem:[%s287 + $0xb0] sm:$0xff]
        %v335 = vld [vmem:[%s287 + $0xb8] sm:$0xff]
        %v336 = vld [vmem:[%s287 + $0xc0] sm:$0xff]
        %v337 = vld [vmem:[%s287 + $0xc8] sm:$0xff]
        %v338 = vld [vmem:[%s287 + $0xd0] sm:$0xff]
        %v339 = vld [vmem:[%s287 + $0xd8] sm:$0xff]
        %v340 = vld [vmem:[%s287 + $0xe0] sm:$0xff]
        %v341 = vld [vmem:[%s287 + $0xe8] sm:$0xff]
        %v342 = vld [vmem:[%s287 + $0xf0] sm:$0xff]
        %v343 = vld [vmem:[%s287 + $0xf8] sm:$0xff]
        %vm344 = vcmask 31744
        %v345 = vsel %vm344, %v312, 0.0
        %346 = vadd.xlane.f32.xlu0 %v345
        %v347 = vpop.xlane.xlu0 %346
        %v348 = vsel %vm344, %v313, 0.0
        %349 = vadd.xlane.f32.xlu0 %v348
        %v350 = vpop.xlane.xlu0 %349
        %v351 = vsel %vm344, %v314, 0.0
        %352 = vadd.xlane.f32.xlu0 %v351
        %v353 = vpop.xlane.xlu0 %352
        %v354 = vsel %vm344, %v315, 0.0
        %355 = vadd.xlane.f32.xlu0 %v354
        %v356 = vpop.xlane.xlu0 %355
        %v357 = vsel %vm344, %v316, 0.0
        %358 = vadd.xlane.f32.xlu0 %v357
        %v359 = vpop.xlane.xlu0 %358
        %v360 = vsel %vm344, %v317, 0.0
        %361 = vadd.xlane.f32.xlu0 %v360
        %v362 = vpop.xlane.xlu0 %361
        %v363 = vsel %vm344, %v318, 0.0
        %364 = vadd.xlane.f32.xlu0 %v363
        %v365 = vpop.xlane.xlu0 %364
        %v366 = vsel %vm344, %v319, 0.0
        %367 = vadd.xlane.f32.xlu0 %v366
        %v368 = vpop.xlane.xlu0 %367
        %v369 = vsel %vm344, %v320, 0.0
        %370 = vadd.xlane.f32.xlu0 %v369
        %v371 = vpop.xlane.xlu0 %370
        %v372 = vsel %vm344, %v321, 0.0
        %373 = vadd.xlane.f32.xlu0 %v372
        %v374 = vpop.xlane.xlu0 %373
        %v375 = vsel %vm344, %v322, 0.0
        %376 = vadd.xlane.f32.xlu0 %v375
        %v377 = vpop.xlane.xlu0 %376
        %v378 = vsel %vm344, %v323, 0.0
        %379 = vadd.xlane.f32.xlu0 %v378
        %v380 = vpop.xlane.xlu0 %379
        %v381 = vsel %vm344, %v324, 0.0
        %382 = vadd.xlane.f32.xlu0 %v381
        %v383 = vpop.xlane.xlu0 %382
        %v384 = vsel %vm344, %v325, 0.0
        %385 = vadd.xlane.f32.xlu0 %v384
        %v386 = vpop.xlane.xlu0 %385
        %v387 = vsel %vm344, %v326, 0.0
        %388 = vadd.xlane.f32.xlu0 %v387
        %v389 = vpop.xlane.xlu0 %388
        %v390 = vsel %vm344, %v327, 0.0
        %391 = vadd.xlane.f32.xlu0 %v390
        %v392 = vpop.xlane.xlu0 %391
        %v393 = vsel %vm344, %v328, 0.0
        %394 = vadd.xlane.f32.xlu0 %v393
        %v395 = vpop.xlane.xlu0 %394
        %v396 = vsel %vm344, %v329, 0.0
        %397 = vadd.xlane.f32.xlu0 %v396
        %v398 = vpop.xlane.xlu0 %397
        %v399 = vsel %vm344, %v330, 0.0
        %400 = vadd.xlane.f32.xlu0 %v399
        %v401 = vpop.xlane.xlu0 %400
        %v402 = vsel %vm344, %v331, 0.0
        %403 = vadd.xlane.f32.xlu0 %v402
        %v404 = vpop.xlane.xlu0 %403
        %v405 = vsel %vm344, %v332, 0.0
        %406 = vadd.xlane.f32.xlu0 %v405
        %v407 = vpop.xlane.xlu0 %406
        %v408 = vsel %vm344, %v333, 0.0
        %409 = vadd.xlane.f32.xlu0 %v408
        %v410 = vpop.xlane.xlu0 %409
        %v411 = vsel %vm344, %v334, 0.0
        %412 = vadd.xlane.f32.xlu0 %v411
        %v413 = vpop.xlane.xlu0 %412
        %v414 = vsel %vm344, %v335, 0.0
        %415 = vadd.xlane.f32.xlu0 %v414
        %v416 = vpop.xlane.xlu0 %415
        %v417 = vsel %vm344, %v336, 0.0
        %418 = vadd.xlane.f32.xlu0 %v417
        %v419 = vpop.xlane.xlu0 %418
        %v420 = vsel %vm344, %v337, 0.0
        %421 = vadd.xlane.f32.xlu0 %v420
        %v422 = vpop.xlane.xlu0 %421
        %v423 = vsel %vm344, %v338, 0.0
        %424 = vadd.xlane.f32.xlu0 %v423
        %v425 = vpop.xlane.xlu0 %424
        %v426 = vsel %vm344, %v339, 0.0
        %427 = vadd.xlane.f32.xlu0 %v426
        %v428 = vpop.xlane.xlu0 %427
        %v429 = vsel %vm344, %v340, 0.0
        %430 = vadd.xlane.f32.xlu0 %v429
        %v431 = vpop.xlane.xlu0 %430
        %v432 = vsel %vm344, %v341, 0.0
        %433 = vadd.xlane.f32.xlu0 %v432
        %v434 = vpop.xlane.xlu0 %433
        %v435 = vsel %vm344, %v342, 0.0
        %436 = vadd.xlane.f32.xlu0 %v435
        %v437 = vpop.xlane.xlu0 %436
        %v438 = vsel %vm344, %v343, 0.0
        %439 = vadd.xlane.f32.xlu0 %v438
        %v440 = vpop.xlane.xlu0 %439
        %v473 = vlaneseq
        %v474 = vand.u32 %v473, 127
        %v475 = vlaneseq
        %v476 = vshrl.u32 %v475, 7
        %v477 = vsub.s32 %v474, %v476
        %v478 = vrot.slane %v347, %v477
        %v479 = vadd.s32 %v474, 4294967288
        %v480 = vlaneseq
        %v481 = vshrl.u32 %v480, 7
        %v482 = vsub.s32 %v479, %v481
        %v483 = vrot.slane %v350, %v482
        %vm484 = vcmask 130112
        %v485 = vsel %vm484, %v483, %v478
        %v486 = vadd.s32 %v474, 4294967280
        %v487 = vlaneseq
        %v488 = vshrl.u32 %v487, 7
        %v489 = vsub.s32 %v486, %v488
        %v490 = vrot.slane %v353, %v489
        %vm491 = vcmask 195712
        %v492 = vsel %vm491, %v490, %v485
        %v493 = vadd.s32 %v474, 4294967272
        %v494 = vlaneseq
        %v495 = vshrl.u32 %v494, 7
        %v496 = vsub.s32 %v493, %v495
        %v497 = vrot.slane %v356, %v496
        %vm498 = vcmask 261312
        %v499 = vsel %vm498, %v497, %v492
        %v500 = vadd.s32 %v474, 4294967264
        %v501 = vlaneseq
        %v502 = vshrl.u32 %v501, 7
        %v503 = vsub.s32 %v500, %v502
        %v504 = vrot.slane %v359, %v503
        %vm505 = vcmask 326912
        %v506 = vsel %vm505, %v504, %v499
        %v507 = vadd.s32 %v474, 4294967256
        %v508 = vlaneseq
        %v509 = vshrl.u32 %v508, 7
        %v510 = vsub.s32 %v507, %v509
        %v511 = vrot.slane %v362, %v510
        %vm512 = vcmask 392512
        %v513 = vsel %vm512, %v511, %v506
        %v514 = vadd.s32 %v474, 4294967248
        %v515 = vlaneseq
        %v516 = vshrl.u32 %v515, 7
        %v517 = vsub.s32 %v514, %v516
        %v518 = vrot.slane %v365, %v517
        %vm519 = vcmask 458112
        %v520 = vsel %vm519, %v518, %v513
        %v521 = vadd.s32 %v474, 4294967240
        %v522 = vlaneseq
        %v523 = vshrl.u32 %v522, 7
        %v524 = vsub.s32 %v521, %v523
        %v525 = vrot.slane %v368, %v524
        %vm526 = vcmask 523712
        %v527 = vsel %vm526, %v525, %v520
        %v528 = vadd.s32 %v474, 4294967232
        %v529 = vlaneseq
        %v530 = vshrl.u32 %v529, 7
        %v531 = vsub.s32 %v528, %v530
        %v532 = vrot.slane %v371, %v531
        %vm533 = vcmask 589312
        %v534 = vsel %vm533, %v532, %v527
        %v535 = vadd.s32 %v474, 4294967224
        %v536 = vlaneseq
        %v537 = vshrl.u32 %v536, 7
        %v538 = vsub.s32 %v535, %v537
        %v539 = vrot.slane %v374, %v538
        %vm540 = vcmask 654912
        %v541 = vsel %vm540, %v539, %v534
        %v542 = vadd.s32 %v474, 4294967216
        %v543 = vlaneseq
        %v544 = vshrl.u32 %v543, 7
        %v545 = vsub.s32 %v542, %v544
        %v546 = vrot.slane %v377, %v545
        %vm547 = vcmask 720512
        %v548 = vsel %vm547, %v546, %v541
        %v549 = vadd.s32 %v474, 4294967208
        %v550 = vlaneseq
        %v551 = vshrl.u32 %v550, 7
        %v552 = vsub.s32 %v549, %v551
        %v553 = vrot.slane %v380, %v552
        %vm554 = vcmask 786112
        %v555 = vsel %vm554, %v553, %v548
        %v556 = vadd.s32 %v474, 4294967200
        %v557 = vlaneseq
        %v558 = vshrl.u32 %v557, 7
        %v559 = vsub.s32 %v556, %v558
        %v560 = vrot.slane %v383, %v559
        %vm561 = vcmask 851712
        %v562 = vsel %vm561, %v560, %v555
        %v563 = vadd.s32 %v474, 4294967192
        %v564 = vlaneseq
        %v565 = vshrl.u32 %v564, 7
        %v566 = vsub.s32 %v563, %v565
        %v567 = vrot.slane %v386, %v566
        %vm568 = vcmask 917312
        %v569 = vsel %vm568, %v567, %v562
        %v570 = vadd.s32 %v474, 4294967184
        %v571 = vlaneseq
        %v572 = vshrl.u32 %v571, 7
        %v573 = vsub.s32 %v570, %v572
        %v574 = vrot.slane %v389, %v573
        %vm575 = vcmask 982912
        %v576 = vsel %vm575, %v574, %v569
        %v577 = vadd.s32 %v474, 4294967176
        %v578 = vlaneseq
        %v579 = vshrl.u32 %v578, 7
        %v580 = vsub.s32 %v577, %v579
        %v581 = vrot.slane %v392, %v580
        %vm582 = vcmask 1048512
        %v583 = vsel %vm582, %v581, %v576
        %v584 = vlaneseq
        %v585 = vshrl.u32 %v584, 7
        %v586 = vsub.s32 %v474, %v585
        %v587 = vrot.slane %v395, %v586
        %v588 = vlaneseq
        %v589 = vshrl.u32 %v588, 7
        %v590 = vsub.s32 %v479, %v589
        %v591 = vrot.slane %v398, %v590
        %v592 = vsel %vm484, %v591, %v587
        %v593 = vlaneseq
        %v594 = vshrl.u32 %v593, 7
        %v595 = vsub.s32 %v486, %v594
        %v596 = vrot.slane %v401, %v595
        %v597 = vsel %vm491, %v596, %v592
        %v598 = vlaneseq
        %v599 = vshrl.u32 %v598, 7
        %v600 = vsub.s32 %v493, %v599
        %v601 = vrot.slane %v404, %v600
        %v602 = vsel %vm498, %v601, %v597
        %v603 = vlaneseq
        %v604 = vshrl.u32 %v603, 7
        %v605 = vsub.s32 %v500, %v604
        %v606 = vrot.slane %v407, %v605
        %v607 = vsel %vm505, %v606, %v602
        %v608 = vlaneseq
        %v609 = vshrl.u32 %v608, 7
        %v610 = vsub.s32 %v507, %v609
        %v611 = vrot.slane %v410, %v610
        %v612 = vsel %vm512, %v611, %v607
        %v613 = vlaneseq
        %v614 = vshrl.u32 %v613, 7
        %v615 = vsub.s32 %v514, %v614
        %v616 = vrot.slane %v413, %v615
        %v617 = vsel %vm519, %v616, %v612
        %v618 = vlaneseq
        %v619 = vshrl.u32 %v618, 7
        %v620 = vsub.s32 %v521, %v619
        %v621 = vrot.slane %v416, %v620
        %v622 = vsel %vm526, %v621, %v617
        %v623 = vlaneseq
        %v624 = vshrl.u32 %v623, 7
        %v625 = vsub.s32 %v528, %v624
        %v626 = vrot.slane %v419, %v625
        %v627 = vsel %vm533, %v626, %v622
        %v628 = vlaneseq
        %v629 = vshrl.u32 %v628, 7
        %v630 = vsub.s32 %v535, %v629
        %v631 = vrot.slane %v422, %v630
        %v632 = vsel %vm540, %v631, %v627
        %v633 = vlaneseq
        %v634 = vshrl.u32 %v633, 7
        %v635 = vsub.s32 %v542, %v634
        %v636 = vrot.slane %v425, %v635
        %v637 = vsel %vm547, %v636, %v632
        %v638 = vlaneseq
        %v639 = vshrl.u32 %v638, 7
        %v640 = vsub.s32 %v549, %v639
        %v641 = vrot.slane %v428, %v640
        %v642 = vsel %vm554, %v641, %v637
        %v643 = vlaneseq
        %v644 = vshrl.u32 %v643, 7
        %v645 = vsub.s32 %v556, %v644
        %v646 = vrot.slane %v431, %v645
        %v647 = vsel %vm561, %v646, %v642
        %v648 = vlaneseq
        %v649 = vshrl.u32 %v648, 7
        %v650 = vsub.s32 %v563, %v649
        %v651 = vrot.slane %v434, %v650
        %v652 = vsel %vm568, %v651, %v647
        %v653 = vlaneseq
        %v654 = vshrl.u32 %v653, 7
        %v655 = vsub.s32 %v570, %v654
        %v656 = vrot.slane %v437, %v655
        %v657 = vsel %vm575, %v656, %v652
        %v658 = vlaneseq
        %v659 = vshrl.u32 %v658, 7
        %v660 = vsub.s32 %v577, %v659
        %v661 = vrot.slane %v440, %v660
        %v662 = vsel %vm582, %v661, %v657
        %vm663 = vcmask 1041409
        %v664 = vsel %vm663, %v662, %v583
        %v666 = vadd.f32 %v311, %v664
        %667 = vst [vmem:[#allocation2] sm:$0x3] %v666
        // Predicated region
        $region67: #{tpu_custom_call.1} parent=57 // pred_check
          %p668 = pneg %p306
        $region68: #{tpu_custom_call.1} parent=57 // pred_check_branch
          %670 = sbr.rel (%p668) target = $region70
        $region69: #{tpu_custom_call.1} parent=57 // pred_region
          %v671 = vld [vmem:[#allocation2] sm:$0x3]
          %v672 = vmul.f32 %v671, 0.25
          %673 = vst [vmem:[%s303] sm:$0x3] %v672
        $region70: #{tpu_custom_call.1} parent=57 // pred_fallthru
          _
        %s674 = sand.u32 %s74, 1
        %s675 = scalar_lea.sflag [#allocation5], %s674
        %s676 = sand.u32 %s74, 1
        %s677 = smul.addr %s676, 2
        %s678 = scalar_lea.vmem [#allocation4], %s677
        // Predicated region
        $region71: #{tpu_custom_call.1} parent=57 // pred_check
          %p679 = pneg %p84
        $region72: #{tpu_custom_call.1} parent=57 // pred_check_branch
          %681 = sbr.rel (%p679) target = $region74
        $region73: #{tpu_custom_call.1} parent=57 // pred_region
          %s683 = ssub.s32 32, 32
          %684 = vsyncadd %s675, %s683
          %s685 = smul.addr %s20, 2
          %s686 = sadd.s32 %s21, %s685
          %s687 = smul.addr %s686, 32
          %s688 = scalar_lea.hbm %s1, %s687
          %s690 = sshll.u32 %s678, 4
          %s691 = int_to_ptr.vmem [resolvable:$true] %s690
          %693 = dma.vmem_to_hbm [thread:$0]  %s691, 32, %s688, %s675
        $region74: #{tpu_custom_call.1} parent=57 // pred_fallthru
          _
      $region58: #{tpu_custom_call.1} parent=5 // pred_fallthru
        _
      %p694 = scmp.le.s32.totalorder 2, %s10
      // Predicated region
      $region75: #{tpu_custom_call.1} parent=5 // pred_check
        %p695 = pneg %p694
      $region76: #{tpu_custom_call.1} parent=5 // pred_check_branch
        %697 = sbr.rel (%p695) target = $region78
      $region77: #{tpu_custom_call.1} parent=5 // pred_region
        %s698 = ssub.s32 %s10, 2
        // Predicated region
        $region79: #{tpu_custom_call.1} parent=77 // pred_check
          %p699 = pneg %p90
        $region80: #{tpu_custom_call.1} parent=77 // pred_check_branch
          %701 = sbr.rel (%p699) target = $region82
        $region81: #{tpu_custom_call.1} parent=77 // pred_region
          %s702 = sand.u32 %s75, 1
          %s703 = scalar_lea.sflag [#allocation5], %s702
          %s704 = sand.u32 %s75, 1
          %s705 = smul.addr %s704, 2
          %s706 = scalar_lea.vmem [#allocation4], %s705
          %707 = dma.done %s703, 32
        $region82: #{tpu_custom_call.1} parent=77 // pred_fallthru
          _
      $region78: #{tpu_custom_call.1} parent=5 // pred_fallthru
        _
    $region6: #{tpu_custom_call.1} parent=1 // loop_footer
      %s14 = sadd.s32 1, %s10
    $region7: #{tpu_custom_call.1} parent=1 // loop_footer_branch
      %9 = sbr.rel target = $region3
    $region8: #{tpu_custom_call.1} parent=1 // loop_exit
      _
    %708 = vsyncpa [#allocation5], 1
    %s709 = scalar_lea.sflag [#allocation5], 1
    %710 = vsyncpa %s709, 1

</llo_original>
